<compile_context>
chip_gen: v5e
topology: v5e:2x2
jax: 0.10.0
libtpu: 0.0.40
codegen_flags: <defaults>
</compile_context>

<pallas_src>
import functools
from math import sqrt

import numpy as np
import jax
import jax.numpy as jnp
from jax.experimental import pallas as pl
from jax.experimental.pallas import tpu as pltpu


_NEG_BIG = float(np.finfo(np.float32).min)   # top-k "already selected" sentinel
_NEG_SAMPLE = -1.0e30                        # "key never sampled for this row" additive mask


def _vmem_capacity_bytes(default=128 * 1024 * 1024):
    """Per-TensorCore VMEM capacity (v5e/v6e: 128 MiB, v7x: 64 MiB)."""
    try:
        return int(pltpu.get_tpu_info().vmem_capacity_bytes)
    except Exception:
        return default


def _pick_key_chunk(L, max_chunk=512):
    """Key-axis chunk for the M-score matmul: bounds the (TB, L, lk) f32 score temp."""
    if L <= max_chunk:
        return L
    for c in range(max_chunk, 127, -1):
        if L % c == 0:
            return c
    return L


def _pick_block_heads(bh, L, D, u, lk, *, vmem_budget, max_tb=32):
    """Largest head-batch TB that divides BH, fits the VMEM budget, keeps >=2 grid steps."""
    per_head = (
        2 * 2 * (2 * D * L)      # Q + K blocks, bf16, double-buffered
        + 2 * (4 * L * L)        # dense f32 output block, double-buffered
        + 4 * L * lk             # in-kernel f32 score chunk temp
        + 4 * 4 * u * L          # sel/selT scratch + reduced scores + attn temps
    )
    fixed = 2 * 2 * (4 * L * L)  # resident f32 sample counts + additive mask
    avail = max(vmem_budget - fixed, per_head)
    cap = max(1, avail // max(per_head, 1))
    cap = min(cap, max_tb)
    if bh >= 2:
        cap = min(cap, max(1, bh // 2))   # keep >=2 grid steps so both v7x TensorCores work
    cap = max(1, min(cap, bh))
    for tb in range(cap, 0, -1):
        if bh % tb == 0:
            return tb
    return 1


def _prob_attn_kernel(q_ref, k_ref, cnt_ref, nmask_ref, o_ref, sel_ref, selt_ref,
                      *, scale, u, tb, lk):
    # q_ref/k_ref : (TB, D, L) bf16 -- D on sublanes, L lane-dense.
    # cnt_ref     : (L, L) f32 sample multiplicities (resident: constant block index).
    # nmask_ref   : (L, L) f32, 0 where key j sampled for query row i else -1e30.
    # o_ref       : (TB, L, L) f32 dense attention-matrix block.
    # sel_ref     : (TB, u, L) f32 scratch, one-hot of selected rows (row index on lanes).
    # selt_ref    : (TB, L, u) f32 scratch, transposed one-hot (row index on sublanes).
    L = q_ref.shape[2]
    q = q_ref[...]                                           # (TB, D, L)

    # ---- sparsity measure M(q) = max_sampled(QK) - sum_sampled(QK) / L ----------------
    # Key axis processed in static chunks so the f32 score temp stays bounded at large L.
    s_sum = jnp.zeros((tb, L), jnp.float32)
    s_max = jnp.full((tb, L), _NEG_SAMPLE, jnp.float32)
    for c0 in range(0, L, lk):
        kc = k_ref[:, :, pl.ds(c0, lk)]                      # (TB, D, lk), static slice
        s = jnp.einsum("bdq,bdk->bqk", q, kc,
                       preferred_element_type=jnp.float32)   # (TB, L, lk) f32
        cnt_c = cnt_ref[:, pl.ds(c0, lk)]                    # (L, lk)
        msk_c = nmask_ref[:, pl.ds(c0, lk)]                  # (L, lk)
        s_sum = s_sum + jnp.sum(s * cnt_c[None, :, :], axis=-1)
        s_max = jnp.maximum(s_max, jnp.max(s + msk_c[None, :, :], axis=-1))
    m_score = s_max - s_sum * (1.0 / L)                      # (TB, L)

    # ---- in-kernel top-u row selection: u iterative max + mask passes -----------------
    lane = jax.lax.broadcasted_iota(jnp.int32, (tb, L), 1).astype(jnp.float32)
    sub = jax.lax.broadcasted_iota(jnp.int32, (tb, L, 1), 1).astype(jnp.float32)
    m_work = m_score
    for t in range(u):
        cur = jnp.max(m_work, axis=-1, keepdims=True)                           # (TB, 1)
        hit = m_work >= cur
        idx = jnp.min(jnp.where(hit, lane, float(L)), axis=-1, keepdims=True)   # (TB, 1)
        onehot = (lane == idx).astype(jnp.float32)                              # (TB, L)
        sel_ref[:, pl.ds(t, 1), :] = onehot.reshape(tb, 1, L)
        selt_ref[:, :, pl.ds(t, 1)] = (sub == idx.reshape(tb, 1, 1)).astype(jnp.float32)
        m_work = jnp.where(onehot > 0.5, _NEG_BIG, m_work)

    # ---- reduced-Q attention over the selected rows ------------------------------------
    sel = sel_ref[...]                                       # (TB, u, L), exact 0/1
    k_all = k_ref[...]                                       # (TB, D, L)
    q_red = jnp.einsum("bul,bdl->bud", sel.astype(q.dtype), q,
                       preferred_element_type=jnp.float32).astype(q.dtype)   # exact row gather
    scores = jnp.einsum("bud,bdk->buk", q_red, k_all,
                        preferred_element_type=jnp.float32) * scale          # (TB, u, L) f32
    scores_max = jnp.max(scores, axis=-1, keepdims=True)
    e = jnp.exp(scores - scores_max)
    attn = e / jnp.sum(e, axis=-1, keepdims=True)            # f32 softmax rows

    # ---- dense scatter back to (TB, L, L) on the MXU -----------------------------------
    # out[b, l, k] = sum_t selT[b, l, t] * attn[b, t, k]: selected rows get their softmax
    # row, every other row is exactly zero (matches the torch zero-fill + index assign).
    o_ref[...] = jnp.einsum("blu,buk->blk", selt_ref[...], attn,
                            preferred_element_type=jnp.float32)


def _prob_attention_impl(queries, keys, factor, rng_key):
    """queries, keys: [B, L, H, D] -> dense attention matrix [B, H, L, L] (f32)."""
    B, L, H, D = queries.shape
    BH = B * H
    compute_dtype = jnp.bfloat16

    log_l = int(np.ceil(np.log(L)))
    U_part = min(2 * factor * log_l, L)      # sampled keys per query row
    u = min(factor * log_l, L)               # number of "active" query rows kept

    # [B, L, H, D] -> [B*H, D, L]: D on sublanes, L on the 128-lane axis so Q/K tiles and
    # MXU feeds are lane-dense for typical D = 32..64.  bf16 MXU inputs, f32 accumulation.
    # TODO(synk): fuse this transpose into the producer projection to avoid the extra HBM
    # round trip on large problems.
    q2 = jnp.transpose(queries, (0, 2, 3, 1)).reshape(BH, D, L).astype(compute_dtype)
    k2 = jnp.transpose(keys, (0, 2, 3, 1)).reshape(BH, D, L).astype(compute_dtype)

    # Random key sample shared across batch/heads (matches torch.randint usage).
    #   counts[i, j]   = multiplicity of key j in query-row i's sample (duplicates add to
    #                    the sampled sum, reproducing the reference gather semantics).
    #   neg_mask[i, j] = 0 if key j was sampled for row i else -1e30 (drops it from the
    #                    sampled max).  Prebuilt in f32 so no per-step casts in the kernel.
    index_sample = jax.random.randint(rng_key, (L, U_part), 0, L)
    row_ids = jnp.broadcast_to(jnp.arange(L)[:, None], (L, U_part))
    counts = jnp.zeros((L, L), jnp.int32).at[row_ids, index_sample].add(1)
    counts_f32 = counts.astype(jnp.float32)
    neg_mask = jnp.where(counts > 0, 0.0, _NEG_SAMPLE).astype(jnp.float32)

    # Generation-aware VMEM: picker budget and Mosaic limit derived from the same per-core
    # capacity (v7x: 64 MiB -> 24/48 MiB, v5e/v6e: 128 MiB -> 48/96 MiB).
    vmem_cap = _vmem_capacity_bytes()
    vmem_limit = int(0.75 * vmem_cap)
    picker_budget = int(0.375 * vmem_cap)

    lk = _pick_key_chunk(L)
    TB = _pick_block_heads(BH, L, D, u, lk, vmem_budget=picker_budget)
    grid = (BH // TB,)

    kern = functools.partial(_prob_attn_kernel, scale=1.0 / sqrt(D), u=u, tb=TB, lk=lk)
    out = pl.pallas_call(
        kern,
        out_shape=jax.ShapeDtypeStruct((BH, L, L), jnp.float32),
        grid=grid,
        in_specs=[
            pl.BlockSpec((TB, D, L), lambda i: (i, 0, 0)),
            pl.BlockSpec((TB, D, L), lambda i: (i, 0, 0)),
            pl.BlockSpec((L, L), lambda i: (0, 0)),   # resident across grid steps
            pl.BlockSpec((L, L), lambda i: (0, 0)),   # resident across grid steps
        ],
        out_specs=pl.BlockSpec((TB, L, L), lambda i: (i, 0, 0)),
        scratch_shapes=[
            pltpu.VMEM((TB, u, L), jnp.float32),      # one-hot of selected rows
            pltpu.VMEM((TB, L, u), jnp.float32),      # transposed one-hot (scatter lhs)
        ],
        compiler_params=pltpu.CompilerParams(
            dimension_semantics=("parallel",),
            vmem_limit_bytes=vmem_limit,
        ),
    )(q2, k2, counts_f32, neg_mask)

    # Dense f32 output kept for parity with the PyTorch module.
    # TODO(synk): emit compact (BH, u, L) rows + indices (or a bf16 dense matrix) when the
    # consumer can accept it -- the dense f32 writeback dominates HBM traffic at large L.
    return out.reshape(B, H, L, L)


prob_attention = jax.jit(_prob_attention_impl, static_argnums=(2,))


if __name__ == "__main__":
    key = jax.random.PRNGKey(0)
    kq, kk, ks = jax.random.split(key, 3)

    B, L, H, D = 2, 16, 2, 32
    factor = 2  # ProbAttention(factor=2)

    queries = jax.random.normal(kq, (B, L, H, D), dtype=jnp.float32)
    keys = jax.random.normal(kk, (B, L, H, D), dtype=jnp.float32)

    out = prob_attention(queries, keys, factor, ks)
    out = jax.block_until_ready(out)

    # sanity: exactly u rows per (b, h) hold a softmax distribution, the rest are zero
    u = min(factor * int(np.ceil(np.log(L))), L)
    row_sums = np.asarray(out.sum(-1))                    # (B, H, L)
    n_active = (row_sums > 0.5).sum(-1)
    assert out.shape == (B, H, L, L)
    assert np.all(n_active == u), n_active
    assert np.allclose(row_sums[row_sums > 0.5], 1.0, atol=2e-3)

    print("KERNEL_OK")
</pallas_src>

<mosaic_0001>
module attributes {stable_mosaic.version = 11 : i64} {
  func.func @_prob_attn_kernel(%arg0: i32, %arg1: memref<2x32x16xbf16, #tpu.memory_space<vmem>>, %arg2: memref<2x32x16xbf16, #tpu.memory_space<vmem>>, %arg3: memref<16x16xf32, #tpu.memory_space<vmem>>, %arg4: memref<16x16xf32, #tpu.memory_space<vmem>>, %arg5: memref<2x16x16xf32, #tpu.memory_space<vmem>>, %arg6: memref<2x6x16xf32, #tpu.memory_space<vmem>>, %arg7: memref<2x16x6xf32, #tpu.memory_space<vmem>>) attributes {dimension_semantics = [#tpu.dimension_semantics<parallel>], iteration_bounds = array<i64: 2>, scalar_prefetch = 0 : i64, scratch_operands = 2 : i64, tpu.core_type = #tpu.core_type<tc>, window_params = [{transform_indices = @transform_0, window_bounds = array<i64: 2, 32, 16>}, {transform_indices = @transform_1, window_bounds = array<i64: 2, 32, 16>}, {pipeline_mode = #tpu.pipeline_mode<synchronous>, transform_indices = @transform_2, window_bounds = array<i64: 16, 16>}, {pipeline_mode = #tpu.pipeline_mode<synchronous>, transform_indices = @transform_3, window_bounds = array<i64: 16, 16>}, {transform_indices = @transform_4, window_bounds = array<i64: 2, 16, 16>}]} {
    %c0 = arith.constant 0 : index
    %c0_0 = arith.constant 0 : index
    %c0_1 = arith.constant 0 : index
    %0 = vector.load %arg1[%c0, %c0_0, %c0_1] : memref<2x32x16xbf16, #tpu.memory_space<vmem>>, vector<2x32x16xbf16>
    %cst = arith.constant 0.000000e+00 : f32
    %1 = vector.broadcast %cst : f32 to vector<2x16xf32>
    %cst_2 = arith.constant -1.000000e+30 : f32
    %2 = vector.broadcast %cst_2 : f32 to vector<2x16xf32>
    %c0_3 = arith.constant 0 : index
    %c0_4 = arith.constant 0 : index
    %c0_5 = arith.constant 0 : index
    %3 = vector.load %arg2[%c0_3, %c0_4, %c0_5] : memref<2x32x16xbf16, #tpu.memory_space<vmem>>, vector<2x32x16xbf16>
    "tpu.trace_start"() <{level = 10 : i32, message = "bdq,bdk->bqk"}> : () -> ()
    %cst_6 = arith.constant dense<0.000000e+00> : vector<2x16x16xf32>
    %4 = tpu.matmul %0, %3, %cst_6 {dimension_numbers = #tpu.dot_dimension_numbers<[1], [1], [2], [2], [0, 0, 0, 2, 1, 2], [0], [0]>} : vector<2x32x16xbf16>, vector<2x32x16xbf16>, vector<2x16x16xf32> -> vector<2x16x16xf32>
    "tpu.trace_stop"() : () -> ()
    %c0_7 = arith.constant 0 : index
    %c0_8 = arith.constant 0 : index
    %5 = vector.load %arg3[%c0_7, %c0_8] : memref<16x16xf32, #tpu.memory_space<vmem>>, vector<16x16xf32>
    %c0_9 = arith.constant 0 : index
    %c0_10 = arith.constant 0 : index
    %6 = vector.load %arg4[%c0_9, %c0_10] : memref<16x16xf32, #tpu.memory_space<vmem>>, vector<16x16xf32>
    %7 = vector.shape_cast %5 : vector<16x16xf32> to vector<1x16x16xf32>
    %8 = vector.broadcast %7 : vector<1x16x16xf32> to vector<2x16x16xf32>
    %9 = arith.mulf %4, %8 : vector<2x16x16xf32>
    %cst_11 = arith.constant dense<0.000000e+00> : vector<2x16xf32>
    %10 = vector.multi_reduction <add>, %9, %cst_11 [2] : vector<2x16x16xf32> to vector<2x16xf32>
    %11 = arith.addf %1, %10 : vector<2x16xf32>
    %12 = vector.shape_cast %6 : vector<16x16xf32> to vector<1x16x16xf32>
    %13 = vector.broadcast %12 : vector<1x16x16xf32> to vector<2x16x16xf32>
    %14 = arith.addf %4, %13 : vector<2x16x16xf32>
    %cst_12 = arith.constant dense<0xFF800000> : vector<2x16xf32>
    %15 = vector.multi_reduction <maximumf>, %14, %cst_12 [2] : vector<2x16x16xf32> to vector<2x16xf32>
    %16 = arith.maximumf %2, %15 : vector<2x16xf32>
    %cst_13 = arith.constant 6.250000e-02 : f32
    %17 = vector.broadcast %cst_13 : f32 to vector<2x16xf32>
    %18 = arith.mulf %11, %17 : vector<2x16xf32>
    %19 = arith.subf %16, %18 : vector<2x16xf32>
    %20 = tpu.iota {dimensions = array<i32: 1>} : vector<2x16xi32>
    %21 = arith.sitofp %20 : vector<2x16xi32> to vector<2x16xf32>
    %22 = tpu.iota {dimensions = array<i32: 1>} : vector<2x16x1xi32>
    %23 = arith.sitofp %22 : vector<2x16x1xi32> to vector<2x16x1xf32>
    %cst_14 = arith.constant dense<0xFF800000> : vector<2xf32>
    %24 = vector.multi_reduction <maximumf>, %19, %cst_14 [1] : vector<2x16xf32> to vector<2xf32>
    %25 = vector.shape_cast %24 : vector<2xf32> to vector<2x1xf32>
    %26 = vector.broadcast %25 : vector<2x1xf32> to vector<2x16xf32>
    %27 = arith.cmpf oge, %19, %26 : vector<2x16xf32>
    %cst_15 = arith.constant 1.600000e+01 : f32
    %28 = vector.broadcast %cst_15 : f32 to vector<2x16xf32>
    %29 = arith.select %27, %21, %28 : vector<2x16xi1>, vector<2x16xf32>
    %cst_16 = arith.constant dense<0x7F800000> : vector<2xf32>
    %30 = vector.multi_reduction <minimumf>, %29, %cst_16 [1] : vector<2x16xf32> to vector<2xf32>
    %31 = vector.shape_cast %30 : vector<2xf32> to vector<2x1xf32>
    %32 = vector.broadcast %31 : vector<2x1xf32> to vector<2x16xf32>
    %33 = arith.cmpf oeq, %21, %32 : vector<2x16xf32>
    %34 = arith.extui %33 : vector<2x16xi1> to vector<2x16xi32>
    %35 = arith.sitofp %34 : vector<2x16xi32> to vector<2x16xf32>
    %36 = vector.shape_cast %35 : vector<2x16xf32> to vector<2x1x16xf32>
    %c0_17 = arith.constant 0 : index
    %c0_18 = arith.constant 0 : index
    %c0_19 = arith.constant 0 : index
    %37 = vector.load %arg6[%c0_17, %c0_18, %c0_19] : memref<2x6x16xf32, #tpu.memory_space<vmem>>, vector<2x1x16xf32>
    tpu.vector_store %arg6[%c0_17, %c0_18, %c0_19], %36 {strides = array<i32>} : memref<2x6x16xf32, #tpu.memory_space<vmem>>, vector<2x1x16xf32>,
    %38 = vector.shape_cast %31 : vector<2x1xf32> to vector<2x1x1xf32>
    %39 = vector.broadcast %38 : vector<2x1x1xf32> to vector<2x16x1xf32>
    %40 = arith.cmpf oeq, %23, %39 : vector<2x16x1xf32>
    %41 = arith.extui %40 : vector<2x16x1xi1> to vector<2x16x1xi32>
    %42 = arith.sitofp %41 : vector<2x16x1xi32> to vector<2x16x1xf32>
    %c0_20 = arith.constant 0 : index
    %c0_21 = arith.constant 0 : index
    %c0_22 = arith.constant 0 : index
    %43 = vector.load %arg7[%c0_20, %c0_21, %c0_22] : memref<2x16x6xf32, #tpu.memory_space<vmem>>, vector<2x16x1xf32>
    tpu.vector_store %arg7[%c0_20, %c0_21, %c0_22], %42 {strides = array<i32>} : memref<2x16x6xf32, #tpu.memory_space<vmem>>, vector<2x16x1xf32>,
    %cst_23 = arith.constant 5.000000e-01 : f32
    %44 = vector.broadcast %cst_23 : f32 to vector<2x16xf32>
    %45 = arith.cmpf ogt, %35, %44 : vector<2x16xf32>
    %cst_24 = arith.constant -3.40282347E+38 : f32
    %46 = vector.broadcast %cst_24 : f32 to vector<2x16xf32>
    %47 = arith.select %45, %46, %19 : vector<2x16xi1>, vector<2x16xf32>
    %cst_25 = arith.constant dense<0xFF800000> : vector<2xf32>
    %48 = vector.multi_reduction <maximumf>, %47, %cst_25 [1] : vector<2x16xf32> to vector<2xf32>
    %49 = vector.shape_cast %48 : vector<2xf32> to vector<2x1xf32>
    %50 = vector.broadcast %49 : vector<2x1xf32> to vector<2x16xf32>
    %51 = arith.cmpf oge, %47, %50 : vector<2x16xf32>
    %cst_26 = arith.constant 1.600000e+01 : f32
    %52 = vector.broadcast %cst_26 : f32 to vector<2x16xf32>
    %53 = arith.select %51, %21, %52 : vector<2x16xi1>, vector<2x16xf32>
    %cst_27 = arith.constant dense<0x7F800000> : vector<2xf32>
    %54 = vector.multi_reduction <minimumf>, %53, %cst_27 [1] : vector<2x16xf32> to vector<2xf32>
    %55 = vector.shape_cast %54 : vector<2xf32> to vector<2x1xf32>
    %56 = vector.broadcast %55 : vector<2x1xf32> to vector<2x16xf32>
    %57 = arith.cmpf oeq, %21, %56 : vector<2x16xf32>
    %58 = arith.extui %57 : vector<2x16xi1> to vector<2x16xi32>
    %59 = arith.sitofp %58 : vector<2x16xi32> to vector<2x16xf32>
    %60 = vector.shape_cast %59 : vector<2x16xf32> to vector<2x1x16xf32>
    %c0_28 = arith.constant 0 : index
    %c1 = arith.constant 1 : index
    %c0_29 = arith.constant 0 : index
    %61 = vector.load %arg6[%c0_28, %c1, %c0_29] : memref<2x6x16xf32, #tpu.memory_space<vmem>>, vector<2x1x16xf32>
    tpu.vector_store %arg6[%c0_28, %c1, %c0_29], %60 {strides = array<i32>} : memref<2x6x16xf32, #tpu.memory_space<vmem>>, vector<2x1x16xf32>,
    %62 = vector.shape_cast %55 : vector<2x1xf32> to vector<2x1x1xf32>
    %63 = vector.broadcast %62 : vector<2x1x1xf32> to vector<2x16x1xf32>
    %64 = arith.cmpf oeq, %23, %63 : vector<2x16x1xf32>
    %65 = arith.extui %64 : vector<2x16x1xi1> to vector<2x16x1xi32>
    %66 = arith.sitofp %65 : vector<2x16x1xi32> to vector<2x16x1xf32>
    %c0_30 = arith.constant 0 : index
    %c0_31 = arith.constant 0 : index
    %c1_32 = arith.constant 1 : index
    %67 = vector.load %arg7[%c0_30, %c0_31, %c1_32] : memref<2x16x6xf32, #tpu.memory_space<vmem>>, vector<2x16x1xf32>
    tpu.vector_store %arg7[%c0_30, %c0_31, %c1_32], %66 {strides = array<i32>} : memref<2x16x6xf32, #tpu.memory_space<vmem>>, vector<2x16x1xf32>,
    %cst_33 = arith.constant 5.000000e-01 : f32
    %68 = vector.broadcast %cst_33 : f32 to vector<2x16xf32>
    %69 = arith.cmpf ogt, %59, %68 : vector<2x16xf32>
    %cst_34 = arith.constant -3.40282347E+38 : f32
    %70 = vector.broadcast %cst_34 : f32 to vector<2x16xf32>
    %71 = arith.select %69, %70, %47 : vector<2x16xi1>, vector<2x16xf32>
    %cst_35 = arith.constant dense<0xFF800000> : vector<2xf32>
    %72 = vector.multi_reduction <maximumf>, %71, %cst_35 [1] : vector<2x16xf32> to vector<2xf32>
    %73 = vector.shape_cast %72 : vector<2xf32> to vector<2x1xf32>
    %74 = vector.broadcast %73 : vector<2x1xf32> to vector<2x16xf32>
    %75 = arith.cmpf oge, %71, %74 : vector<2x16xf32>
    %cst_36 = arith.constant 1.600000e+01 : f32
    %76 = vector.broadcast %cst_36 : f32 to vector<2x16xf32>
    %77 = arith.select %75, %21, %76 : vector<2x16xi1>, vector<2x16xf32>
    %cst_37 = arith.constant dense<0x7F800000> : vector<2xf32>
    %78 = vector.multi_reduction <minimumf>, %77, %cst_37 [1] : vector<2x16xf32> to vector<2xf32>
    %79 = vector.shape_cast %78 : vector<2xf32> to vector<2x1xf32>
    %80 = vector.broadcast %79 : vector<2x1xf32> to vector<2x16xf32>
    %81 = arith.cmpf oeq, %21, %80 : vector<2x16xf32>
    %82 = arith.extui %81 : vector<2x16xi1> to vector<2x16xi32>
    %83 = arith.sitofp %82 : vector<2x16xi32> to vector<2x16xf32>
    %84 = vector.shape_cast %83 : vector<2x16xf32> to vector<2x1x16xf32>
    %c0_38 = arith.constant 0 : index
    %c2 = arith.constant 2 : index
    %c0_39 = arith.constant 0 : index
    %85 = vector.load %arg6[%c0_38, %c2, %c0_39] : memref<2x6x16xf32, #tpu.memory_space<vmem>>, vector<2x1x16xf32>
    tpu.vector_store %arg6[%c0_38, %c2, %c0_39], %84 {strides = array<i32>} : memref<2x6x16xf32, #tpu.memory_space<vmem>>, vector<2x1x16xf32>,
    %86 = vector.shape_cast %79 : vector<2x1xf32> to vector<2x1x1xf32>
    %87 = vector.broadcast %86 : vector<2x1x1xf32> to vector<2x16x1xf32>
    %88 = arith.cmpf oeq, %23, %87 : vector<2x16x1xf32>
    %89 = arith.extui %88 : vector<2x16x1xi1> to vector<2x16x1xi32>
    %90 = arith.sitofp %89 : vector<2x16x1xi32> to vector<2x16x1xf32>
    %c0_40 = arith.constant 0 : index
    %c0_41 = arith.constant 0 : index
    %c2_42 = arith.constant 2 : index
    %91 = vector.load %arg7[%c0_40, %c0_41, %c2_42] : memref<2x16x6xf32, #tpu.memory_space<vmem>>, vector<2x16x1xf32>
    tpu.vector_store %arg7[%c0_40, %c0_41, %c2_42], %90 {strides = array<i32>} : memref<2x16x6xf32, #tpu.memory_space<vmem>>, vector<2x16x1xf32>,
    %cst_43 = arith.constant 5.000000e-01 : f32
    %92 = vector.broadcast %cst_43 : f32 to vector<2x16xf32>
    %93 = arith.cmpf ogt, %83, %92 : vector<2x16xf32>
    %cst_44 = arith.constant -3.40282347E+38 : f32
    %94 = vector.broadcast %cst_44 : f32 to vector<2x16xf32>
    %95 = arith.select %93, %94, %71 : vector<2x16xi1>, vector<2x16xf32>
    %cst_45 = arith.constant dense<0xFF800000> : vector<2xf32>
    %96 = vector.multi_reduction <maximumf>, %95, %cst_45 [1] : vector<2x16xf32> to vector<2xf32>
    %97 = vector.shape_cast %96 : vector<2xf32> to vector<2x1xf32>
    %98 = vector.broadcast %97 : vector<2x1xf32> to vector<2x16xf32>
    %99 = arith.cmpf oge, %95, %98 : vector<2x16xf32>
    %cst_46 = arith.constant 1.600000e+01 : f32
    %100 = vector.broadcast %cst_46 : f32 to vector<2x16xf32>
    %101 = arith.select %99, %21, %100 : vector<2x16xi1>, vector<2x16xf32>
    %cst_47 = arith.constant dense<0x7F800000> : vector<2xf32>
    %102 = vector.multi_reduction <minimumf>, %101, %cst_47 [1] : vector<2x16xf32> to vector<2xf32>
    %103 = vector.shape_cast %102 : vector<2xf32> to vector<2x1xf32>
    %104 = vector.broadcast %103 : vector<2x1xf32> to vector<2x16xf32>
    %105 = arith.cmpf oeq, %21, %104 : vector<2x16xf32>
    %106 = arith.extui %105 : vector<2x16xi1> to vector<2x16xi32>
    %107 = arith.sitofp %106 : vector<2x16xi32> to vector<2x16xf32>
    %108 = vector.shape_cast %107 : vector<2x16xf32> to vector<2x1x16xf32>
    %c0_48 = arith.constant 0 : index
    %c3 = arith.constant 3 : index
    %c0_49 = arith.constant 0 : index
    %109 = vector.load %arg6[%c0_48, %c3, %c0_49] : memref<2x6x16xf32, #tpu.memory_space<vmem>>, vector<2x1x16xf32>
    tpu.vector_store %arg6[%c0_48, %c3, %c0_49], %108 {strides = array<i32>} : memref<2x6x16xf32, #tpu.memory_space<vmem>>, vector<2x1x16xf32>,
    %110 = vector.shape_cast %103 : vector<2x1xf32> to vector<2x1x1xf32>
    %111 = vector.broadcast %110 : vector<2x1x1xf32> to vector<2x16x1xf32>
    %112 = arith.cmpf oeq, %23, %111 : vector<2x16x1xf32>
    %113 = arith.extui %112 : vector<2x16x1xi1> to vector<2x16x1xi32>
    %114 = arith.sitofp %113 : vector<2x16x1xi32> to vector<2x16x1xf32>
    %c0_50 = arith.constant 0 : index
    %c0_51 = arith.constant 0 : index
    %c3_52 = arith.constant 3 : index
    %115 = vector.load %arg7[%c0_50, %c0_51, %c3_52] : memref<2x16x6xf32, #tpu.memory_space<vmem>>, vector<2x16x1xf32>
    tpu.vector_store %arg7[%c0_50, %c0_51, %c3_52], %114 {strides = array<i32>} : memref<2x16x6xf32, #tpu.memory_space<vmem>>, vector<2x16x1xf32>,
    %cst_53 = arith.constant 5.000000e-01 : f32
    %116 = vector.broadcast %cst_53 : f32 to vector<2x16xf32>
    %117 = arith.cmpf ogt, %107, %116 : vector<2x16xf32>
    %cst_54 = arith.constant -3.40282347E+38 : f32
    %118 = vector.broadcast %cst_54 : f32 to vector<2x16xf32>
    %119 = arith.select %117, %118, %95 : vector<2x16xi1>, vector<2x16xf32>
    %cst_55 = arith.constant dense<0xFF800000> : vector<2xf32>
    %120 = vector.multi_reduction <maximumf>, %119, %cst_55 [1] : vector<2x16xf32> to vector<2xf32>
    %121 = vector.shape_cast %120 : vector<2xf32> to vector<2x1xf32>
    %122 = vector.broadcast %121 : vector<2x1xf32> to vector<2x16xf32>
    %123 = arith.cmpf oge, %119, %122 : vector<2x16xf32>
    %cst_56 = arith.constant 1.600000e+01 : f32
    %124 = vector.broadcast %cst_56 : f32 to vector<2x16xf32>
    %125 = arith.select %123, %21, %124 : vector<2x16xi1>, vector<2x16xf32>
    %cst_57 = arith.constant dense<0x7F800000> : vector<2xf32>
    %126 = vector.multi_reduction <minimumf>, %125, %cst_57 [1] : vector<2x16xf32> to vector<2xf32>
    %127 = vector.shape_cast %126 : vector<2xf32> to vector<2x1xf32>
    %128 = vector.broadcast %127 : vector<2x1xf32> to vector<2x16xf32>
    %129 = arith.cmpf oeq, %21, %128 : vector<2x16xf32>
    %130 = arith.extui %129 : vector<2x16xi1> to vector<2x16xi32>
    %131 = arith.sitofp %130 : vector<2x16xi32> to vector<2x16xf32>
    %132 = vector.shape_cast %131 : vector<2x16xf32> to vector<2x1x16xf32>
    %c0_58 = arith.constant 0 : index
    %c4 = arith.constant 4 : index
    %c0_59 = arith.constant 0 : index
    %133 = vector.load %arg6[%c0_58, %c4, %c0_59] : memref<2x6x16xf32, #tpu.memory_space<vmem>>, vector<2x1x16xf32>
    tpu.vector_store %arg6[%c0_58, %c4, %c0_59], %132 {strides = array<i32>} : memref<2x6x16xf32, #tpu.memory_space<vmem>>, vector<2x1x16xf32>,
    %134 = vector.shape_cast %127 : vector<2x1xf32> to vector<2x1x1xf32>
    %135 = vector.broadcast %134 : vector<2x1x1xf32> to vector<2x16x1xf32>
    %136 = arith.cmpf oeq, %23, %135 : vector<2x16x1xf32>
    %137 = arith.extui %136 : vector<2x16x1xi1> to vector<2x16x1xi32>
    %138 = arith.sitofp %137 : vector<2x16x1xi32> to vector<2x16x1xf32>
    %c0_60 = arith.constant 0 : index
    %c0_61 = arith.constant 0 : index
    %c4_62 = arith.constant 4 : index
    %139 = vector.load %arg7[%c0_60, %c0_61, %c4_62] : memref<2x16x6xf32, #tpu.memory_space<vmem>>, vector<2x16x1xf32>
    tpu.vector_store %arg7[%c0_60, %c0_61, %c4_62], %138 {strides = array<i32>} : memref<2x16x6xf32, #tpu.memory_space<vmem>>, vector<2x16x1xf32>,
    %cst_63 = arith.constant 5.000000e-01 : f32
    %140 = vector.broadcast %cst_63 : f32 to vector<2x16xf32>
    %141 = arith.cmpf ogt, %131, %140 : vector<2x16xf32>
    %cst_64 = arith.constant -3.40282347E+38 : f32
    %142 = vector.broadcast %cst_64 : f32 to vector<2x16xf32>
    %143 = arith.select %141, %142, %119 : vector<2x16xi1>, vector<2x16xf32>
    %cst_65 = arith.constant dense<0xFF800000> : vector<2xf32>
    %144 = vector.multi_reduction <maximumf>, %143, %cst_65 [1] : vector<2x16xf32> to vector<2xf32>
    %145 = vector.shape_cast %144 : vector<2xf32> to vector<2x1xf32>
    %146 = vector.broadcast %145 : vector<2x1xf32> to vector<2x16xf32>
    %147 = arith.cmpf oge, %143, %146 : vector<2x16xf32>
    %cst_66 = arith.constant 1.600000e+01 : f32
    %148 = vector.broadcast %cst_66 : f32 to vector<2x16xf32>
    %149 = arith.select %147, %21, %148 : vector<2x16xi1>, vector<2x16xf32>
    %cst_67 = arith.constant dense<0x7F800000> : vector<2xf32>
    %150 = vector.multi_reduction <minimumf>, %149, %cst_67 [1] : vector<2x16xf32> to vector<2xf32>
    %151 = vector.shape_cast %150 : vector<2xf32> to vector<2x1xf32>
    %152 = vector.broadcast %151 : vector<2x1xf32> to vector<2x16xf32>
    %153 = arith.cmpf oeq, %21, %152 : vector<2x16xf32>
    %154 = arith.extui %153 : vector<2x16xi1> to vector<2x16xi32>
    %155 = arith.sitofp %154 : vector<2x16xi32> to vector<2x16xf32>
    %156 = vector.shape_cast %155 : vector<2x16xf32> to vector<2x1x16xf32>
    %c0_68 = arith.constant 0 : index
    %c5 = arith.constant 5 : index
    %c0_69 = arith.constant 0 : index
    %157 = vector.load %arg6[%c0_68, %c5, %c0_69] : memref<2x6x16xf32, #tpu.memory_space<vmem>>, vector<2x1x16xf32>
    tpu.vector_store %arg6[%c0_68, %c5, %c0_69], %156 {strides = array<i32>} : memref<2x6x16xf32, #tpu.memory_space<vmem>>, vector<2x1x16xf32>,
    %158 = vector.shape_cast %151 : vector<2x1xf32> to vector<2x1x1xf32>
    %159 = vector.broadcast %158 : vector<2x1x1xf32> to vector<2x16x1xf32>
    %160 = arith.cmpf oeq, %23, %159 : vector<2x16x1xf32>
    %161 = arith.extui %160 : vector<2x16x1xi1> to vector<2x16x1xi32>
    %162 = arith.sitofp %161 : vector<2x16x1xi32> to vector<2x16x1xf32>
    %c0_70 = arith.constant 0 : index
    %c0_71 = arith.constant 0 : index
    %c5_72 = arith.constant 5 : index
    %163 = vector.load %arg7[%c0_70, %c0_71, %c5_72] : memref<2x16x6xf32, #tpu.memory_space<vmem>>, vector<2x16x1xf32>
    tpu.vector_store %arg7[%c0_70, %c0_71, %c5_72], %162 {strides = array<i32>} : memref<2x16x6xf32, #tpu.memory_space<vmem>>, vector<2x16x1xf32>,
    %c0_73 = arith.constant 0 : index
    %c0_74 = arith.constant 0 : index
    %c0_75 = arith.constant 0 : index
    %164 = vector.load %arg6[%c0_73, %c0_74, %c0_75] : memref<2x6x16xf32, #tpu.memory_space<vmem>>, vector<2x6x16xf32>
    %c0_76 = arith.constant 0 : index
    %c0_77 = arith.constant 0 : index
    %c0_78 = arith.constant 0 : index
    %165 = vector.load %arg2[%c0_76, %c0_77, %c0_78] : memref<2x32x16xbf16, #tpu.memory_space<vmem>>, vector<2x32x16xbf16>
    %166 = arith.truncf %164 : vector<2x6x16xf32> to vector<2x6x16xbf16>
    "tpu.trace_start"() <{level = 10 : i32, message = "bul,bdl->bud"}> : () -> ()
    %cst_79 = arith.constant dense<0.000000e+00> : vector<2x6x32xf32>
    %167 = tpu.matmul %166, %0, %cst_79 {dimension_numbers = #tpu.dot_dimension_numbers<[2], [2], [1], [1], [0, 0, 0, 1, 1, 1], [0], [0]>} : vector<2x6x16xbf16>, vector<2x32x16xbf16>, vector<2x6x32xf32> -> vector<2x6x32xf32>
    "tpu.trace_stop"() : () -> ()
    %168 = arith.truncf %167 : vector<2x6x32xf32> to vector<2x6x32xbf16>
    "tpu.trace_start"() <{level = 10 : i32, message = "bud,bdk->buk"}> : () -> ()
    %cst_80 = arith.constant dense<0.000000e+00> : vector<2x6x16xf32>
    %169 = tpu.matmul %168, %165, %cst_80 {dimension_numbers = #tpu.dot_dimension_numbers<[2], [1], [1], [2], [0, 0, 0, 1, 1, 2], [0], [0]>} : vector<2x6x32xbf16>, vector<2x32x16xbf16>, vector<2x6x16xf32> -> vector<2x6x16xf32>
    "tpu.trace_stop"() : () -> ()
    %cst_81 = arith.constant 0.176776692 : f32
    %170 = vector.broadcast %cst_81 : f32 to vector<2x6x16xf32>
    %171 = arith.mulf %169, %170 : vector<2x6x16xf32>
    %cst_82 = arith.constant dense<0xFF800000> : vector<2x6xf32>
    %172 = vector.multi_reduction <maximumf>, %171, %cst_82 [2] : vector<2x6x16xf32> to vector<2x6xf32>
    %173 = vector.shape_cast %172 : vector<2x6xf32> to vector<2x6x1xf32>
    %174 = vector.broadcast %173 : vector<2x6x1xf32> to vector<2x6x16xf32>
    %175 = arith.subf %171, %174 : vector<2x6x16xf32>
    %176 = math.exp %175 : vector<2x6x16xf32>
    %cst_83 = arith.constant dense<0.000000e+00> : vector<2x6xf32>
    %177 = vector.multi_reduction <add>, %176, %cst_83 [2] : vector<2x6x16xf32> to vector<2x6xf32>
    %178 = vector.shape_cast %177 : vector<2x6xf32> to vector<2x6x1xf32>
    %179 = vector.broadcast %178 : vector<2x6x1xf32> to vector<2x6x16xf32>
    %180 = arith.divf %176, %179 : vector<2x6x16xf32>
    %c0_84 = arith.constant 0 : index
    %c0_85 = arith.constant 0 : index
    %c0_86 = arith.constant 0 : index
    %181 = vector.load %arg7[%c0_84, %c0_85, %c0_86] : memref<2x16x6xf32, #tpu.memory_space<vmem>>, vector<2x16x6xf32>
    "tpu.trace_start"() <{level = 10 : i32, message = "blu,buk->blk"}> : () -> ()
    %cst_87 = arith.constant dense<0.000000e+00> : vector<2x16x16xf32>
    %182 = tpu.matmul %181, %180, %cst_87 {dimension_numbers = #tpu.dot_dimension_numbers<[2], [1], [1], [2], [0, 0, 0, 1, 1, 2], [0], [0]>} : vector<2x16x6xf32>, vector<2x6x16xf32>, vector<2x16x16xf32> -> vector<2x16x16xf32>
    "tpu.trace_stop"() : () -> ()
    %c0_88 = arith.constant 0 : index
    %c0_89 = arith.constant 0 : index
    %c0_90 = arith.constant 0 : index
    %183 = vector.load %arg5[%c0_88, %c0_89, %c0_90] : memref<2x16x16xf32, #tpu.memory_space<vmem>>, vector<2x16x16xf32>
    tpu.vector_store %arg5[%c0_88, %c0_89, %c0_90], %182 {strides = array<i32>} : memref<2x16x16xf32, #tpu.memory_space<vmem>>, vector<2x16x16xf32>,
    return
  }
  func.func @transform_0(%arg0: i32) -> (i32, i32, i32) {
    %c0_i32 = arith.constant 0 : i32
    %c0_i32_0 = arith.constant 0 : i32
    %c0_i32_1 = arith.constant 0 : i32
    return %arg0, %c0_i32, %c0_i32_0 : i32, i32, i32
  }
  func.func @transform_1(%arg0: i32) -> (i32, i32, i32) {
    %c0_i32 = arith.constant 0 : i32
    %c0_i32_0 = arith.constant 0 : i32
    %c0_i32_1 = arith.constant 0 : i32
    return %arg0, %c0_i32, %c0_i32_0 : i32, i32, i32
  }
  func.func @transform_2(%arg0: i32) -> (i32, i32) {
    %c0_i32 = arith.constant 0 : i32
    %c0_i32_0 = arith.constant 0 : i32
    %c0_i32_1 = arith.constant 0 : i32
    return %c0_i32, %c0_i32_0 : i32, i32
  }
  func.func @transform_3(%arg0: i32) -> (i32, i32) {
    %c0_i32 = arith.constant 0 : i32
    %c0_i32_0 = arith.constant 0 : i32
    %c0_i32_1 = arith.constant 0 : i32
    return %c0_i32, %c0_i32_0 : i32, i32
  }
  func.func @transform_4(%arg0: i32) -> (i32, i32, i32) {
    %c0_i32 = arith.constant 0 : i32
    %c0_i32_0 = arith.constant 0 : i32
    %c0_i32_1 = arith.constant 0 : i32
    return %arg0, %c0_i32, %c0_i32_0 : i32, i32, i32
  }
}

</mosaic_0001>

<llo_original>
// kernel: _prob_attention_impl.1
$region0: #{_prob_attention_impl.1}
  #allocation0 [shape = 'u32[]', space=smem, size = 0x4, offset = 0x4, fixed_abs, tag = 'smem constant byte address 0x4 - core index']
  #allocation1 [shape = 'u32[72,128]{1,0:T(1,128)}', space=vmem, size = 0x9000, scoped, tag = 'internal scratch']
  #allocation2 [shape = 'f32[2,6,16]{2,1,0:T(8,128)}', space=vmem, size = 0x2000, scoped, tag = 'scratch operand']
  #allocation3 [shape = 'f32[2,16,6]{2,1,0:T(8,128)}', space=vmem, size = 0x4000, scoped, tag = 'scratch operand']
  %s0 = inlined_call_operand.vmem [shape: bf16[4,32,16], index: 0, kind: input, shape index: {}]
  %s1 = inlined_call_operand.vmem [shape: bf16[4,32,16], index: 1, kind: input, shape index: {}]
  %s2 = inlined_call_operand.vmem [shape: f32[16,16], index: 2, kind: input, shape index: {}]
  %s3 = inlined_call_operand.vmem [shape: f32[16,16], index: 3, kind: input, shape index: {}]
  %s4 = inlined_call_operand.hbm [shape: f32[4,16,16], index: 4, kind: output, shape index: {}]
  %s5 = sld [smem:[#allocation0]]
  $region49: #{_prob_attention_impl.1} parent=0
    _
  %s7 = ssub.s32 1, %s5
  %s8 = scalar_select 0, %s7, %s5
  $region1: #{_prob_attention_impl.1} parent=0
    #allocation4 [shape = 'u8[32768]{0}', space=vmem, size = 0x8000, scoped, tag = 'output window, operand 0']
    #allocation5 [shape = 's32[2]{0}', space=sflag, size = 0x8, scoped, tag = 'scoped memory for _prob_attention_impl.1']
    %9 = vsyncpa [#allocation5], 0
    %s10 = scalar_lea.sflag [#allocation5], 1
    %11 = vsyncpa %s10, 0
    loop: start=0, step=1, limit=4
    $region2: #{_prob_attention_impl.1} parent=1 // loop_pre_header
      _
    $region3: #{_prob_attention_impl.1} parent=1 // loop_header
      %s13 = sphi 0, %s17
      %p14 = scmp.ge.s32.totalorder %s13, 4
      %s23 = sphi 0, %s25
      %s26 = sphi 0, %s23
      %s27 = sphi 0, %s26
      %s43 = sphi 0, %s27
      %s49 = sphi 0, %s51
      %s52 = sphi 0, %s49
      %s53 = sphi 0, %s52
      %s69 = sphi 0, %s53
      %s73 = sphi 0, %s73
      %s75 = sphi 0, %s73
      %s76 = sphi 0, %s75
      %s90 = sphi 0, %s76
      %s94 = sphi 0, %s94
      %s96 = sphi 0, %s94
      %s97 = sphi 0, %s96
      %s111 = sphi 0, %s97
      %s117 = sphi 0, %s119
      %s120 = sphi 0, %s117
      %s121 = sphi 0, %s120
      %s137 = sphi 0, %s121
    $region4: #{_prob_attention_impl.1} parent=1 // loop_header_branch
      %16 = sbr.rel (%p14) target = $region8
    $region5: #{_prob_attention_impl.1} parent=1 // loop_body
      %s18 = ssub.s32 %s13, 1
      %s19 = ssub.s32 %s13, 2
      %s20 = sadd.s32 %s13, 1
      %s21 = ssub.s32 %s13, %s20
      %p22 = scmp.eq.s32.totalorder %s21, 0
      %s24 = sadd.s32 %s23, 1
      %s25 = scalar_select %p22, %s23, %s24
      %p28 = pneg %p22
      %p29 = scmp.eq.s32.totalorder %s13, 1
      %p30 = por %p28, %p29
      %p31 = scmp.ne.s32.totalorder %s23, %s26
      %p32 = scmp.eq.s32.totalorder %s13, 0
      %p33 = por %p31, %p32
      %p34 = scmp.ne.s32.totalorder %s23, %s26
      %p35 = scmp.eq.s32.totalorder %s18, 1
      %p36 = por %p34, %p35
      %p37 = scmp.ne.s32.totalorder %s26, %s27
      %p38 = scmp.eq.s32.totalorder %s18, 0
      %p39 = por %p37, %p38
      %p40 = scmp.ne.s32.totalorder %s26, %s27
      %p41 = scmp.eq.s32.totalorder %s19, 1
      %p42 = por %p40, %p41
      %p44 = scmp.ne.s32.totalorder %s27, %s43
      %p45 = scmp.eq.s32.totalorder %s19, 0
      %p46 = por %p44, %p45
      %s47 = ssub.s32 %s13, %s20
      %p48 = scmp.eq.s32.totalorder %s47, 0
      %s50 = sadd.s32 %s49, 1
      %s51 = scalar_select %p48, %s49, %s50
      %p54 = pneg %p48
      %p55 = scmp.eq.s32.totalorder %s13, 1
      %p56 = por %p54, %p55
      %p57 = scmp.ne.s32.totalorder %s49, %s52
      %p58 = scmp.eq.s32.totalorder %s13, 0
      %p59 = por %p57, %p58
      %p60 = scmp.ne.s32.totalorder %s49, %s52
      %p61 = scmp.eq.s32.totalorder %s18, 1
      %p62 = por %p60, %p61
      %p63 = scmp.ne.s32.totalorder %s52, %s53
      %p64 = scmp.eq.s32.totalorder %s18, 0
      %p65 = por %p63, %p64
      %p66 = scmp.ne.s32.totalorder %s52, %s53
      %p67 = scmp.eq.s32.totalorder %s19, 1
      %p68 = por %p66, %p67
      %p70 = scmp.ne.s32.totalorder %s53, %s69
      %p71 = scmp.eq.s32.totalorder %s19, 0
      %p72 = por %p70, %p71
      %s74 = sadd.s32 %s73, 1
      %p77 = scmp.eq.s32.totalorder %s13, 1
      %p78 = scmp.ne.s32.totalorder %s73, %s75
      %p79 = scmp.eq.s32.totalorder %s13, 0
      %p80 = por %p78, %p79
      %p81 = scmp.ne.s32.totalorder %s73, %s75
      %p82 = scmp.eq.s32.totalorder %s18, 1
      %p83 = por %p81, %p82
      %p84 = scmp.ne.s32.totalorder %s75, %s76
      %p85 = scmp.eq.s32.totalorder %s18, 0
      %p86 = por %p84, %p85
      %p87 = scmp.ne.s32.totalorder %s75, %s76
      %p88 = scmp.eq.s32.totalorder %s19, 1
      %p89 = por %p87, %p88
      %p91 = scmp.ne.s32.totalorder %s76, %s90
      %p92 = scmp.eq.s32.totalorder %s19, 0
      %p93 = por %p91, %p92
      %s95 = sadd.s32 %s94, 1
      %p98 = scmp.eq.s32.totalorder %s13, 1
      %p99 = scmp.ne.s32.totalorder %s94, %s96
      %p100 = scmp.eq.s32.totalorder %s13, 0
      %p101 = por %p99, %p100
      %p102 = scmp.ne.s32.totalorder %s94, %s96
      %p103 = scmp.eq.s32.totalorder %s18, 1
      %p104 = por %p102, %p103
      %p105 = scmp.ne.s32.totalorder %s96, %s97
      %p106 = scmp.eq.s32.totalorder %s18, 0
      %p107 = por %p105, %p106
      %p108 = scmp.ne.s32.totalorder %s96, %s97
      %p109 = scmp.eq.s32.totalorder %s19, 1
      %p110 = por %p108, %p109
      %p112 = scmp.ne.s32.totalorder %s97, %s111
      %p113 = scmp.eq.s32.totalorder %s19, 0
      %p114 = por %p112, %p113
      %s115 = ssub.s32 %s13, %s20
      %p116 = scmp.eq.s32.totalorder %s115, 0
      %s118 = sadd.s32 %s117, 1
      %s119 = scalar_select %p116, %s117, %s118
      %p122 = pneg %p116
      %p123 = scmp.eq.s32.totalorder %s13, 1
      %p124 = por %p122, %p123
      %p125 = scmp.ne.s32.totalorder %s117, %s120
      %p126 = scmp.eq.s32.totalorder %s13, 0
      %p127 = por %p125, %p126
      %p128 = scmp.ne.s32.totalorder %s117, %s120
      %p129 = scmp.eq.s32.totalorder %s18, 1
      %p130 = por %p128, %p129
      %p131 = scmp.ne.s32.totalorder %s120, %s121
      %p132 = scmp.eq.s32.totalorder %s18, 0
      %p133 = por %p131, %p132
      %p134 = scmp.ne.s32.totalorder %s120, %s121
      %p135 = scmp.eq.s32.totalorder %s19, 1
      %p136 = por %p134, %p135
      %p138 = scmp.ne.s32.totalorder %s121, %s137
      %p139 = scmp.eq.s32.totalorder %s19, 0
      %p140 = por %p138, %p139
      %p141 = scmp.le.s32.totalorder 1, %s13
      %p142 = scmp.lt.s32.totalorder %s13, 3
      %p143 = pnand %p141, %p142
      %p144 = pneg %p143
      // Predicated region
      $region9: #{_prob_attention_impl.1} parent=5 // pred_check
        _
      $region10: #{_prob_attention_impl.1} parent=5 // pred_check_branch
        %146 = sbr.rel (%p143) target = $region12
      $region11: #{_prob_attention_impl.1} parent=5 // pred_region
        %s147 = ssub.s32 %s13, 1
        // Predicated region
        $region13: #{_prob_attention_impl.1} parent=11 // pred_check
          %p148 = pneg %p86
        $region14: #{_prob_attention_impl.1} parent=11 // pred_check_branch
          %150 = sbr.rel (%p148) target = $region16
        $region15: #{_prob_attention_impl.1} parent=11 // pred_region
          _
        $region16: #{_prob_attention_impl.1} parent=11 // pred_fallthru
          _
        // Predicated region
        $region17: #{_prob_attention_impl.1} parent=11 // pred_check
          %p151 = pneg %p107
        $region18: #{_prob_attention_impl.1} parent=11 // pred_check_branch
          %153 = sbr.rel (%p151) target = $region20
        $region19: #{_prob_attention_impl.1} parent=11 // pred_region
          _
        $region20: #{_prob_attention_impl.1} parent=11 // pred_fallthru
          _
      $region12: #{_prob_attention_impl.1} parent=5 // pred_fallthru
        _
      %p154 = scmp.lt.s32.totalorder %s13, 2
      // Predicated region
      $region21: #{_prob_attention_impl.1} parent=5 // pred_check
        %p155 = pneg %p154
      $region22: #{_prob_attention_impl.1} parent=5 // pred_check_branch
        %157 = sbr.rel (%p155) target = $region24
      $region23: #{_prob_attention_impl.1} parent=5 // pred_region
        // Predicated region
        $region25: #{_prob_attention_impl.1} parent=23 // pred_check
          %p158 = pneg %p33
        $region26: #{_prob_attention_impl.1} parent=23 // pred_check_branch
          %160 = sbr.rel (%p158) target = $region28
        $region27: #{_prob_attention_impl.1} parent=23 // pred_region
          %s161 = smul.u32 2, %s13
          %p162 = scmp.lt.s32.totalorder %s161, 3
          %s163 = scalar_select %p162, %s161, 3
          %s164 = smul.addr %s163, 4
          %s165 = smul.addr %s164, 4
          %s166 = scalar_lea.vmem %s0, %s165
          %s167 = smul.u32 2, %s13
        $region28: #{_prob_attention_impl.1} parent=23 // pred_fallthru
          _
        // Predicated region
        $region29: #{_prob_attention_impl.1} parent=23 // pred_check
          %p168 = pneg %p59
        $region30: #{_prob_attention_impl.1} parent=23 // pred_check_branch
          %170 = sbr.rel (%p168) target = $region32
        $region31: #{_prob_attention_impl.1} parent=23 // pred_region
          %s171 = smul.u32 2, %s13
          %p172 = scmp.lt.s32.totalorder %s171, 3
          %s173 = scalar_select %p172, %s171, 3
          %s174 = smul.addr %s173, 4
          %s175 = smul.addr %s174, 4
          %s176 = scalar_lea.vmem %s1, %s175
          %s177 = smul.u32 2, %s13
        $region32: #{_prob_attention_impl.1} parent=23 // pred_fallthru
          _
      $region24: #{_prob_attention_impl.1} parent=5 // pred_fallthru
        _
      %p178 = scmp.le.s32.totalorder 1, %s13
      %p179 = scmp.lt.s32.totalorder %s13, 3
      %p180 = pnand %p178, %p179
      %p181 = pneg %p180
      // Predicated region
      $region33: #{_prob_attention_impl.1} parent=5 // pred_check
        _
      $region34: #{_prob_attention_impl.1} parent=5 // pred_check_branch
        %183 = sbr.rel (%p180) target = $region36
      $region35: #{_prob_attention_impl.1} parent=5 // pred_region
        %s184 = ssub.s32 %s13, 1
        %s185 = smul.u32 2, %s18
        %p186 = scmp.lt.s32.totalorder %s185, 3
        %s187 = scalar_select %p186, %s185, 3
        %s188 = smul.addr %s187, 4
        %s189 = smul.addr %s188, 4
        %s190 = scalar_lea.vmem %s0, %s189
        %p191 = pneg %p39
        %p192 = pneg %p36
        %s193 = smul.u32 2, %s18
        %p194 = scmp.lt.s32.totalorder %s193, 3
        %s195 = scalar_select %p194, %s193, 3
        %s196 = smul.addr %s195, 4
        %s197 = smul.addr %s196, 4
        %s198 = scalar_lea.vmem %s1, %s197
        %p199 = pneg %p65
        %p200 = pneg %p62
        %p201 = pneg %p86
        %p202 = pneg %p83
        %p203 = pneg %p107
        %p204 = pneg %p104
        %p205 = pneg %p133
        %p206 = pneg %p130
        %s207 = sand.u32 %s120, 1
        %s208 = scalar_lea.sflag [#allocation5], %s207
        %s209 = sand.u32 %s120, 1
        %s210 = smul.addr %s209, 32
        %s211 = scalar_lea.vmem [#allocation4], %s210
        %s212 = smul.u32 2, %s18
        %p213 = scmp.lt.s32.totalorder %s212, 3
        %s214 = scalar_select %p213, %s212, 3
        %s215 = smul.addr %s214, 4
        %s216 = smul.addr %s215, 4
        %s217 = scalar_lea.vmem %s0, %s216
        %s218 = smul.u32 2, %s18
        %s219 = smul.u32 2, %s18
        %p220 = scmp.lt.s32.totalorder %s219, 3
        %s221 = scalar_select %p220, %s219, 3
        %s222 = smul.addr %s221, 4
        %s223 = smul.addr %s222, 4
        %s224 = scalar_lea.vmem %s1, %s223
        %s225 = smul.u32 2, %s18
        %s226 = smul.u32 2, %s18
        %v228 = vld [vmem:[%s217] sm:$0xf]
        %v229 = vld [vmem:[%s217 + $0x4] sm:$0xf]
        %v230 = vld [vmem:[%s217 + $0x8] sm:$0xf]
        %v231 = vld [vmem:[%s217 + $0xc] sm:$0xf]
        %v232 = vld [vmem:[%s217 + $0x10] sm:$0xf]
        %v233 = vld [vmem:[%s217 + $0x14] sm:$0xf]
        %v234 = vld [vmem:[%s217 + $0x18] sm:$0xf]
        %v235 = vld [vmem:[%s217 + $0x1c] sm:$0xf]
        %v236 = vld [vmem:[%s224] sm:$0xf]
        %v237 = vld [vmem:[%s224 + $0x4] sm:$0xf]
        %v238 = vld [vmem:[%s224 + $0x8] sm:$0xf]
        %v239 = vld [vmem:[%s224 + $0xc] sm:$0xf]
        %v240 = vld [vmem:[%s224 + $0x10] sm:$0xf]
        %v241 = vld [vmem:[%s224 + $0x14] sm:$0xf]
        %v242 = vld [vmem:[%s224 + $0x18] sm:$0xf]
        %v243 = vld [vmem:[%s224 + $0x1c] sm:$0xf]
        %v248 = vunpack.c.l.b16 %v228
        %v249 = vunpack.c.l.b16 %v229
        %v250 = vunpack.c.l.b16 %v230
        %v251 = vunpack.c.l.b16 %v231
        %v252 = vpack.c.b16 %v249, %v248
        %v253 = vpack.c.b16 %v251, %v250
        %256 = vxpose.xlu0.c.b16.start [1/8] %v252, 128
        %257 = vxpose.xlu0.c.b16.cont [2/8] %v253, 128
        %258 = vxpose.xlu0.c.b16.cont [3/8] 0, 128
        %259 = vxpose.xlu0.c.b16.cont [4/8] 0, 128
        %260 = vxpose.xlu0.c.b16.cont [5/8] 0, 128
        %261 = vxpose.xlu0.c.b16.cont [6/8] 0, 128
        %262 = vxpose.xlu0.c.b16.cont [7/8] 0, 128
        %263 = vxpose.xlu0.c.b16.end [8/8] 0, 128
        %v264 = vpop.trf.xlu0
        %v265 = vpop.trf.xlu0
        %v266 = vpop.trf.xlu0
        %v267 = vpop.trf.xlu0
        %v268 = vpop.trf.xlu0
        %v269 = vpop.trf.xlu0
        %v270 = vpop.trf.xlu0
        %v271 = vpop.trf.xlu0
        %v276 = vunpack.c.l.b16 %v236
        %v277 = vunpack.c.l.b16 %v237
        %v278 = vunpack.c.l.b16 %v238
        %v279 = vunpack.c.l.b16 %v239
        %v280 = vpack.c.b16 %v277, %v276
        %v281 = vpack.c.b16 %v279, %v278
        %vm284 = vcmask 261120
        %v286 = vsel %vm284, %v264, 0
        %288 = vmatpush.bf16.msra.mxu0 0
        %289 = vmatpush.bf16.msra.mxu0 0
        %290 = vmatpush.bf16.msra.mxu0 0
        %291 = vmatpush.bf16.msra.mxu0 0
        %292 = vmatpush.bf16.msra.mxu0 0
        %293 = vmatpush.bf16.msra.mxu0 0
        %294 = vmatpush.bf16.msra.mxu0 %v281
        %295 = vmatpush.bf16.msra.mxu0 %v280
        %296 = vmatmul.bf16.gmra.mxu0 %v286
        %v297 = vpop.f32.mrf.mxu0
        %v298 = vadd.f32 0.0, %v297
        %v299 = vpop.f32.mrf.mxu0
        %v300 = vadd.f32 0.0, %v299
        %301 = vdwg.mxu0
        %v306 = vunpack.c.l.b16 %v232
        %v307 = vunpack.c.l.b16 %v233
        %v308 = vunpack.c.l.b16 %v234
        %v309 = vunpack.c.l.b16 %v235
        %v310 = vpack.c.b16 %v307, %v306
        %v311 = vpack.c.b16 %v309, %v308
        %314 = vxpose.xlu0.c.b16.start [1/8] %v310, 128
        %315 = vxpose.xlu0.c.b16.cont [2/8] %v311, 128
        %316 = vxpose.xlu0.c.b16.cont [3/8] 0, 128
        %317 = vxpose.xlu0.c.b16.cont [4/8] 0, 128
        %318 = vxpose.xlu0.c.b16.cont [5/8] 0, 128
        %319 = vxpose.xlu0.c.b16.cont [6/8] 0, 128
        %320 = vxpose.xlu0.c.b16.cont [7/8] 0, 128
        %321 = vxpose.xlu0.c.b16.end [8/8] 0, 128
        %v322 = vpop.trf.xlu0
        %v323 = vpop.trf.xlu0
        %v324 = vpop.trf.xlu0
        %v325 = vpop.trf.xlu0
        %v326 = vpop.trf.xlu0
        %v327 = vpop.trf.xlu0
        %v328 = vpop.trf.xlu0
        %v329 = vpop.trf.xlu0
        %v334 = vunpack.c.l.b16 %v240
        %v335 = vunpack.c.l.b16 %v241
        %v336 = vunpack.c.l.b16 %v242
        %v337 = vunpack.c.l.b16 %v243
        %v338 = vpack.c.b16 %v335, %v334
        %v339 = vpack.c.b16 %v337, %v336
        %v343 = vsel %vm284, %v322, 0
        %345 = vmatpush.bf16.msra.mxu0 0
        %346 = vmatpush.bf16.msra.mxu0 0
        %347 = vmatpush.bf16.msra.mxu0 0
        %348 = vmatpush.bf16.msra.mxu0 0
        %349 = vmatpush.bf16.msra.mxu0 0
        %350 = vmatpush.bf16.msra.mxu0 0
        %351 = vmatpush.bf16.msra.mxu0 %v339
        %352 = vmatpush.bf16.msra.mxu0 %v338
        %353 = vmatmul.bf16.gmra.mxu0 %v343
        %v354 = vpop.f32.mrf.mxu0
        %v355 = vadd.f32 0.0, %v354
        %v356 = vpop.f32.mrf.mxu0
        %v357 = vadd.f32 0.0, %v356
        %358 = vdwg.mxu0
        %v359 = vld [vmem:[%s2] sm:$0xff]
        %v360 = vld [vmem:[%s2 + $0x8] sm:$0xff]
        %v361 = vld [vmem:[%s3] sm:$0xff]
        %v362 = vld [vmem:[%s3 + $0x8] sm:$0xff]
        %v363 = vmul.f32 %v298, %v359
        %v364 = vmul.f32 %v300, %v360
        %v365 = vmul.f32 %v355, %v359
        %v366 = vmul.f32 %v357, %v360
        %vm367 = vcmask 130048
        %v368 = vsel %vm367, %v363, 0.0
        %369 = vadd.xlane.f32.xlu0 %v368
        %v370 = vpop.xlane.xlu0 %369
        %v371 = vsel %vm367, %v364, 0.0
        %372 = vadd.xlane.f32.xlu0 %v371
        %v373 = vpop.xlane.xlu0 %372
        %v374 = vsel %vm367, %v365, 0.0
        %375 = vadd.xlane.f32.xlu0 %v374
        %v376 = vpop.xlane.xlu0 %375
        %v377 = vsel %vm367, %v366, 0.0
        %378 = vadd.xlane.f32.xlu0 %v377
        %v379 = vpop.xlane.xlu0 %378
        %v380 = vadd.f32 %v370, 0.0
        %v381 = vadd.f32 %v373, 0.0
        %v382 = vadd.f32 %v376, 0.0
        %v383 = vadd.f32 %v379, 0.0
        %v384 = vadd.f32 %v298, %v361
        %v385 = vadd.f32 %v300, %v362
        %v386 = vadd.f32 %v355, %v361
        %v387 = vadd.f32 %v357, %v362
        %v388 = vsel %vm367, %v384, -inf
        %389 = vmax.xlane.f32.xlu0 %v388
        %v390 = vpop.xlane.xlu0 %389
        %v391 = vsel %vm367, %v385, -inf
        %392 = vmax.xlane.f32.xlu0 %v391
        %v393 = vpop.xlane.xlu0 %392
        %v394 = vsel %vm367, %v386, -inf
        %395 = vmax.xlane.f32.xlu0 %v394
        %v396 = vpop.xlane.xlu0 %395
        %v397 = vsel %vm367, %v387, -inf
        %398 = vmax.xlane.f32.xlu0 %v397
        %v399 = vpop.xlane.xlu0 %398
        %v400 = vmax.f32 %v390, -1e+30
        %v401 = vmax.f32 %v393, -1e+30
        %v402 = vmax.f32 %v396, -1e+30
        %v403 = vmax.f32 %v399, -1e+30
        %v404 = vmul.f32 %v380, 0.0625
        %v405 = vmul.f32 %v381, 0.0625
        %v406 = vmul.f32 %v382, 0.0625
        %v407 = vmul.f32 %v383, 0.0625
        %v408 = vsub.f32 %v400, %v404
        %v409 = vsub.f32 %v401, %v405
        %v410 = vsub.f32 %v402, %v406
        %v411 = vsub.f32 %v403, %v407
        %v412 = vlaneseq
        %v413 = vand.u32 %v412, 127
        %v414 = vcvt.s32.f32 %v413
        %v415 = vlaneseq
        %v416 = vshrl.u32 %v415, 7
        %v417 = vadd.s32 %v416, 8
        %v418 = vcvt.s32.f32 %v416
        %v419 = vcvt.s32.f32 %v417
        %v424 = vperm.slane %v408, %v413
        %v425 = vadd.s32 %v413, 4294967288
        %v426 = vperm.slane %v409, %v425
        %vm427 = vcmask 130112
        %v428 = vsel %vm427, %v426, %v424
        %v429 = vperm.slane %v410, %v413
        %v430 = vperm.slane %v411, %v425
        %v431 = vsel %vm427, %v430, %v429
        %vm432 = vcmask 1041409
        %v433 = vsel %vm432, %v431, %v428
        %vm435 = vcmask 123904
        %v436 = vsel %vm435, %v433, -inf
        %437 = vmax.xlane.f32.xlu0 %v436
        %v438 = vpop.xlane.xlu0 %437
        %v440 = vperm.slane %v438, 0
        %v441 = vperm.slane %v438, 1
        %vm444 = vcmp.ge.f32.partialorder %v408, %v440
        %vm445 = vcmp.ge.f32.partialorder %v409, %v440
        %vm446 = vcmp.ge.f32.partialorder %v410, %v441
        %vm447 = vcmp.ge.f32.partialorder %v411, %v441
        %v449 = vlaneseq
        %v450 = vshrl.u32 %v449, 7
        %452 = vset.pattern.permute.xlu0 %v450
        %453 = vperm.xlu0 %452, %v414
        %v454 = vpop.permute.xlu0 %453
        %v455 = vlaneseq
        %v456 = vshrl.u32 %v455, 7
        %v457 = vadd.s32 %v456, 8
        %458 = vset.pattern.permute.xlu0 %v457
        %459 = vperm.xlu0 %458, %v414
        %v460 = vpop.permute.xlu0 %459
        %v463 = vsel %vm444, %v454, 16.0
        %v464 = vsel %vm445, %v460, 16.0
        %v465 = vsel %vm446, %v454, 16.0
        %v466 = vsel %vm447, %v460, 16.0
        %471 = vset.pattern.permute.xlu0 0
        %472 = vperm.xlu0 %471, %v463
        %v473 = vpop.permute.xlu0 %472
        %474 = vset.pattern.permute.xlu0 0
        %475 = vperm.xlu0 %474, %v464
        %v476 = vpop.permute.xlu0 %475
        %477 = vset.pattern.permute.xlu0 0
        %478 = vperm.xlu0 %477, %v465
        %v479 = vpop.permute.xlu0 %478
        %480 = vset.pattern.permute.xlu0 0
        %481 = vperm.xlu0 %480, %v466
        %v482 = vpop.permute.xlu0 %481
        %v483 = vperm.slane %v473, %v413
        %v484 = vperm.slane %v476, %v425
        %v485 = vsel %vm427, %v484, %v483
        %v486 = vperm.slane %v479, %v413
        %v487 = vperm.slane %v482, %v425
        %v488 = vsel %vm427, %v487, %v486
        %v489 = vsel %vm432, %v488, %v485
        %v491 = vsel %vm435, %v489, inf
        %492 = vmin.xlane.f32.xlu0 %v491
        %v493 = vpop.xlane.xlu0 %492
        %vm494 = vcmp.eq.f32.partialorder %v414, %v493
        %v495 = vsel %vm494, 1, 0
        %v496 = vcvt.s32.f32 %v495
        %v498 = vrot.slane %v496, 1
        %vm500 = vcmask 122880
        %501 = vst.msk [vmem:[#allocation2] sm:$0x1] %vm500, %v496
        %502 = vst.msk [vmem:[#allocation2 + $0x8] sm:$0x1] %vm500, %v498
        %v504 = vperm.slane %v493, 0
        %v505 = vperm.slane %v493, 1
        %vm508 = vcmp.eq.f32.partialorder %v418, %v504
        %vm509 = vcmp.eq.f32.partialorder %v419, %v504
        %vm510 = vcmp.eq.f32.partialorder %v418, %v505
        %vm511 = vcmp.eq.f32.partialorder %v419, %v505
        %v512 = vsel %vm508, 1, 0
        %v513 = vsel %vm509, 1, 0
        %v514 = vsel %vm510, 1, 0
        %v515 = vsel %vm511, 1, 0
        %v516 = vcvt.s32.f32 %v512
        %v517 = vcvt.s32.f32 %v513
        %v518 = vcvt.s32.f32 %v514
        %v519 = vcvt.s32.f32 %v515
        %vm520 = vcmask 7168
        %521 = vst.msk [vmem:[#allocation3] sm:$0xff] %vm520, %v516
        %522 = vst.msk [vmem:[#allocation3 + $0x8] sm:$0xff] %vm520, %v517
        %523 = vst.msk [vmem:[#allocation3 + $0x10] sm:$0xff] %vm520, %v518
        %524 = vst.msk [vmem:[#allocation3 + $0x18] sm:$0xff] %vm520, %v519
        %vm525 = vcmp.gt.f32.partialorder %v496, 0.5
        %v526 = vsel %vm525, -3.4028235e+38, %v433
        %v527 = vsel %vm435, %v526, -inf
        %528 = vmax.xlane.f32.xlu0 %v527
        %v529 = vpop.xlane.xlu0 %528
        %vm530 = vcmp.ge.f32.partialorder %v526, %v529
        %v531 = vsel %vm530, %v414, 16.0
        %v532 = vsel %vm435, %v531, inf
        %533 = vmin.xlane.f32.xlu0 %v532
        %v534 = vpop.xlane.xlu0 %533
        %vm535 = vcmp.eq.f32.partialorder %v414, %v534
        %v536 = vsel %vm535, 1, 0
        %v537 = vcvt.s32.f32 %v536
        %v539 = vrot.slane %v537, 1
        %541 = vst.msk [vmem:[#allocation2 + $0x1] sm:$0x1] %vm500, %v537
        %542 = vst.msk [vmem:[#allocation2 + $0x9] sm:$0x1] %vm500, %v539
        %v544 = vperm.slane %v534, 0
        %v545 = vperm.slane %v534, 1
        %vm548 = vcmp.eq.f32.partialorder %v418, %v544
        %vm549 = vcmp.eq.f32.partialorder %v419, %v544
        %vm550 = vcmp.eq.f32.partialorder %v418, %v545
        %vm551 = vcmp.eq.f32.partialorder %v419, %v545
        %v552 = vsel %vm548, 1, 0
        %v553 = vsel %vm549, 1, 0
        %v554 = vsel %vm550, 1, 0
        %v555 = vsel %vm551, 1, 0
        %v556 = vcvt.s32.f32 %v552
        %v557 = vcvt.s32.f32 %v553
        %v558 = vcvt.s32.f32 %v554
        %v559 = vcvt.s32.f32 %v555
        %vm560 = vcmask 15368
        %561 = vst.msk [vmem:[#allocation3] sm:$0xff] %vm560, %v556
        %562 = vst.msk [vmem:[#allocation3 + $0x8] sm:$0xff] %vm560, %v557
        %563 = vst.msk [vmem:[#allocation3 + $0x10] sm:$0xff] %vm560, %v558
        %564 = vst.msk [vmem:[#allocation3 + $0x18] sm:$0xff] %vm560, %v559
        %vm565 = vcmp.gt.f32.partialorder %v537, 0.5
        %v566 = vsel %vm565, -3.4028235e+38, %v526
        %v567 = vsel %vm435, %v566, -inf
        %568 = vmax.xlane.f32.xlu0 %v567
        %v569 = vpop.xlane.xlu0 %568
        %vm570 = vcmp.ge.f32.partialorder %v566, %v569
        %v571 = vsel %vm570, %v414, 16.0
        %v572 = vsel %vm435, %v571, inf
        %573 = vmin.xlane.f32.xlu0 %v572
        %v574 = vpop.xlane.xlu0 %573
        %vm575 = vcmp.eq.f32.partialorder %v414, %v574
        %v576 = vsel %vm575, 1, 0
        %v577 = vcvt.s32.f32 %v576
        %v579 = vrot.slane %v577, 1
        %581 = vst.msk [vmem:[#allocation2 + $0x2] sm:$0x1] %vm500, %v577
        %582 = vst.msk [vmem:[#allocation2 + $0xa] sm:$0x1] %vm500, %v579
        %v584 = vperm.slane %v574, 0
        %v585 = vperm.slane %v574, 1
        %vm588 = vcmp.eq.f32.partialorder %v418, %v584
        %vm589 = vcmp.eq.f32.partialorder %v419, %v584
        %vm590 = vcmp.eq.f32.partialorder %v418, %v585
        %vm591 = vcmp.eq.f32.partialorder %v419, %v585
        %v592 = vsel %vm588, 1, 0
        %v593 = vsel %vm589, 1, 0
        %v594 = vsel %vm590, 1, 0
        %v595 = vsel %vm591, 1, 0
        %v596 = vcvt.s32.f32 %v592
        %v597 = vcvt.s32.f32 %v593
        %v598 = vcvt.s32.f32 %v594
        %v599 = vcvt.s32.f32 %v595
        %vm600 = vcmask 23568
        %601 = vst.msk [vmem:[#allocation3] sm:$0xff] %vm600, %v596
        %602 = vst.msk [vmem:[#allocation3 + $0x8] sm:$0xff] %vm600, %v597
        %603 = vst.msk [vmem:[#allocation3 + $0x10] sm:$0xff] %vm600, %v598
        %604 = vst.msk [vmem:[#allocation3 + $0x18] sm:$0xff] %vm600, %v599
        %vm605 = vcmp.gt.f32.partialorder %v577, 0.5
        %v606 = vsel %vm605, -3.4028235e+38, %v566
        %v607 = vsel %vm435, %v606, -inf
        %608 = vmax.xlane.f32.xlu0 %v607
        %v609 = vpop.xlane.xlu0 %608
        %vm610 = vcmp.ge.f32.partialorder %v606, %v609
        %v611 = vsel %vm610, %v414, 16.0
        %v612 = vsel %vm435, %v611, inf
        %613 = vmin.xlane.f32.xlu0 %v612
        %v614 = vpop.xlane.xlu0 %613
        %vm615 = vcmp.eq.f32.partialorder %v414, %v614
        %v616 = vsel %vm615, 1, 0
        %v617 = vcvt.s32.f32 %v616
        %v619 = vrot.slane %v617, 1
        %621 = vst.msk [vmem:[#allocation2 + $0x3] sm:$0x1] %vm500, %v617
        %622 = vst.msk [vmem:[#allocation2 + $0xb] sm:$0x1] %vm500, %v619
        %v624 = vperm.slane %v614, 0
        %v625 = vperm.slane %v614, 1
        %vm628 = vcmp.eq.f32.partialorder %v418, %v624
        %vm629 = vcmp.eq.f32.partialorder %v419, %v624
        %vm630 = vcmp.eq.f32.partialorder %v418, %v625
        %vm631 = vcmp.eq.f32.partialorder %v419, %v625
        %v632 = vsel %vm628, 1, 0
        %v633 = vsel %vm629, 1, 0
        %v634 = vsel %vm630, 1, 0
        %v635 = vsel %vm631, 1, 0
        %v636 = vcvt.s32.f32 %v632
        %v637 = vcvt.s32.f32 %v633
        %v638 = vcvt.s32.f32 %v634
        %v639 = vcvt.s32.f32 %v635
        %vm640 = vcmask 31768
        %641 = vst.msk [vmem:[#allocation3] sm:$0xff] %vm640, %v636
        %642 = vst.msk [vmem:[#allocation3 + $0x8] sm:$0xff] %vm640, %v637
        %643 = vst.msk [vmem:[#allocation3 + $0x10] sm:$0xff] %vm640, %v638
        %644 = vst.msk [vmem:[#allocation3 + $0x18] sm:$0xff] %vm640, %v639
        %vm645 = vcmp.gt.f32.partialorder %v617, 0.5
        %v646 = vsel %vm645, -3.4028235e+38, %v606
        %v647 = vsel %vm435, %v646, -inf
        %648 = vmax.xlane.f32.xlu0 %v647
        %v649 = vpop.xlane.xlu0 %648
        %vm650 = vcmp.ge.f32.partialorder %v646, %v649
        %v651 = vsel %vm650, %v414, 16.0
        %v652 = vsel %vm435, %v651, inf
        %653 = vmin.xlane.f32.xlu0 %v652
        %v654 = vpop.xlane.xlu0 %653
        %vm655 = vcmp.eq.f32.partialorder %v414, %v654
        %v656 = vsel %vm655, 1, 0
        %v657 = vcvt.s32.f32 %v656
        %v659 = vrot.slane %v657, 1
        %661 = vst.msk [vmem:[#allocation2 + $0x4] sm:$0x1] %vm500, %v657
        %662 = vst.msk [vmem:[#allocation2 + $0xc] sm:$0x1] %vm500, %v659
        %v664 = vperm.slane %v654, 0
        %v665 = vperm.slane %v654, 1
        %vm668 = vcmp.eq.f32.partialorder %v418, %v664
        %vm669 = vcmp.eq.f32.partialorder %v419, %v664
        %vm670 = vcmp.eq.f32.partialorder %v418, %v665
        %vm671 = vcmp.eq.f32.partialorder %v419, %v665
        %v672 = vsel %vm668, 1, 0
        %v673 = vsel %vm669, 1, 0
        %v674 = vsel %vm670, 1, 0
        %v675 = vsel %vm671, 1, 0
        %v676 = vcvt.s32.f32 %v672
        %v677 = vcvt.s32.f32 %v673
        %v678 = vcvt.s32.f32 %v674
        %v679 = vcvt.s32.f32 %v675
        %vm680 = vcmask 39968
        %681 = vst.msk [vmem:[#allocation3] sm:$0xff] %vm680, %v676
        %682 = vst.msk [vmem:[#allocation3 + $0x8] sm:$0xff] %vm680, %v677
        %683 = vst.msk [vmem:[#allocation3 + $0x10] sm:$0xff] %vm680, %v678
        %684 = vst.msk [vmem:[#allocation3 + $0x18] sm:$0xff] %vm680, %v679
        %vm685 = vcmp.gt.f32.partialorder %v657, 0.5
        %v686 = vsel %vm685, -3.4028235e+38, %v646
        %v687 = vsel %vm435, %v686, -inf
        %688 = vmax.xlane.f32.xlu0 %v687
        %v689 = vpop.xlane.xlu0 %688
        %vm690 = vcmp.ge.f32.partialorder %v686, %v689
        %v691 = vsel %vm690, %v414, 16.0
        %v692 = vsel %vm435, %v691, inf
        %693 = vmin.xlane.f32.xlu0 %v692
        %v694 = vpop.xlane.xlu0 %693
        %vm695 = vcmp.eq.f32.partialorder %v414, %v694
        %v696 = vsel %vm695, 1, 0
        %v697 = vcvt.s32.f32 %v696
        %v699 = vrot.slane %v697, 1
        %701 = vst.msk [vmem:[#allocation2 + $0x5] sm:$0x1] %vm500, %v697
        %702 = vst.msk [vmem:[#allocation2 + $0xd] sm:$0x1] %vm500, %v699
        %v704 = vperm.slane %v694, 0
        %v705 = vperm.slane %v694, 1
        %vm708 = vcmp.eq.f32.partialorder %v418, %v704
        %vm709 = vcmp.eq.f32.partialorder %v419, %v704
        %vm710 = vcmp.eq.f32.partialorder %v418, %v705
        %vm711 = vcmp.eq.f32.partialorder %v419, %v705
        %v712 = vsel %vm708, 1, 0
        %v713 = vsel %vm709, 1, 0
        %v714 = vsel %vm710, 1, 0
        %v715 = vsel %vm711, 1, 0
        %v716 = vcvt.s32.f32 %v712
        %v717 = vcvt.s32.f32 %v713
        %v718 = vcvt.s32.f32 %v714
        %v719 = vcvt.s32.f32 %v715
        %vm720 = vcmask 48168
        %721 = vst.msk [vmem:[#allocation3] sm:$0xff] %vm720, %v716
        %722 = vst.msk [vmem:[#allocation3 + $0x8] sm:$0xff] %vm720, %v717
        %723 = vst.msk [vmem:[#allocation3 + $0x10] sm:$0xff] %vm720, %v718
        %724 = vst.msk [vmem:[#allocation3 + $0x18] sm:$0xff] %vm720, %v719
        %v725 = vld [vmem:[#allocation2] sm:$0x3f]
        %v726 = vld [vmem:[#allocation2 + $0x8] sm:$0x3f]
        %v727 = vld [vmem:[%s224] sm:$0xf]
        %v728 = vld [vmem:[%s224 + $0x4] sm:$0xf]
        %v729 = vld [vmem:[%s224 + $0x8] sm:$0xf]
        %v730 = vld [vmem:[%s224 + $0xc] sm:$0xf]
        %v731 = vld [vmem:[%s224 + $0x10] sm:$0xf]
        %v732 = vld [vmem:[%s224 + $0x14] sm:$0xf]
        %v733 = vld [vmem:[%s224 + $0x18] sm:$0xf]
        %v734 = vld [vmem:[%s224 + $0x1c] sm:$0xf]
        %v735 = vpack.c.bf16 %v725, %v725
        %v736 = vpack.c.bf16 %v726, %v726
        %v738 = vsel %vm367, %v735, 0
        %v741 = vsel %vm367, %v252, 0
        %v744 = vsel %vm367, %v253, 0
        %746 = vmatpush.bf16.xpose.msra.mxu0 0
        %747 = vmatpush.bf16.xpose.msra.mxu0 0
        %748 = vmatpush.bf16.xpose.msra.mxu0 0
        %749 = vmatpush.bf16.xpose.msra.mxu0 0
        %750 = vmatpush.bf16.xpose.msra.mxu0 0
        %751 = vmatpush.bf16.xpose.msra.mxu0 0
        %752 = vmatpush.bf16.xpose.msra.mxu0 %v744
        %753 = vmatpush.bf16.xpose.msra.mxu0 %v741
        %754 = vmatmul.bf16.gmra.mxu0 %v738
        %v755 = vpop.f32.mrf.mxu0
        %v756 = vadd.f32 0.0, %v755
        %v757 = vpop.f32.mrf.mxu0
        %758 = vdwg.mxu0
        %v760 = vsel %vm367, %v736, 0
        %v763 = vsel %vm367, %v310, 0
        %v766 = vsel %vm367, %v311, 0
        %768 = vmatpush.bf16.xpose.msra.mxu0 0
        %769 = vmatpush.bf16.xpose.msra.mxu0 0
        %770 = vmatpush.bf16.xpose.msra.mxu0 0
        %771 = vmatpush.bf16.xpose.msra.mxu0 0
        %772 = vmatpush.bf16.xpose.msra.mxu0 0
        %773 = vmatpush.bf16.xpose.msra.mxu0 0
        %774 = vmatpush.bf16.xpose.msra.mxu0 %v766
        %775 = vmatpush.bf16.xpose.msra.mxu0 %v763
        %776 = vmatmul.bf16.gmra.mxu0 %v760
        %v777 = vpop.f32.mrf.mxu0
        %v778 = vadd.f32 0.0, %v777
        %v779 = vpop.f32.mrf.mxu0
        %780 = vdwg.mxu0
        %v781 = vpack.c.bf16 %v756, %v756
        %v782 = vpack.c.bf16 %v778, %v778
        %v787 = vunpack.c.l.b16 %v727
        %v788 = vunpack.c.l.b16 %v728
        %v789 = vunpack.c.l.b16 %v729
        %v790 = vunpack.c.l.b16 %v730
        %v791 = vpack.c.b16 %v788, %v787
        %v792 = vpack.c.b16 %v790, %v789
        %v796 = vsel %vm284, %v781, 0
        %798 = vmatpush.bf16.msra.mxu0 0
        %799 = vmatpush.bf16.msra.mxu0 0
        %800 = vmatpush.bf16.msra.mxu0 0
        %801 = vmatpush.bf16.msra.mxu0 0
        %802 = vmatpush.bf16.msra.mxu0 0
        %803 = vmatpush.bf16.msra.mxu0 0
        %804 = vmatpush.bf16.msra.mxu0 %v792
        %805 = vmatpush.bf16.msra.mxu0 %v791
        %806 = vmatmul.bf16.gmra.mxu0 %v796
        %v807 = vpop.f32.mrf.mxu0
        %v808 = vadd.f32 0.0, %v807
        %v809 = vpop.f32.mrf.mxu0
        %810 = vdwg.mxu0
        %v815 = vunpack.c.l.b16 %v731
        %v816 = vunpack.c.l.b16 %v732
        %v817 = vunpack.c.l.b16 %v733
        %v818 = vunpack.c.l.b16 %v734
        %v819 = vpack.c.b16 %v816, %v815
        %v820 = vpack.c.b16 %v818, %v817
        %v824 = vsel %vm284, %v782, 0
        %826 = vmatpush.bf16.msra.mxu0 0
        %827 = vmatpush.bf16.msra.mxu0 0
        %828 = vmatpush.bf16.msra.mxu0 0
        %829 = vmatpush.bf16.msra.mxu0 0
        %830 = vmatpush.bf16.msra.mxu0 0
        %831 = vmatpush.bf16.msra.mxu0 0
        %832 = vmatpush.bf16.msra.mxu0 %v820
        %833 = vmatpush.bf16.msra.mxu0 %v819
        %834 = vmatmul.bf16.gmra.mxu0 %v824
        %v835 = vpop.f32.mrf.mxu0
        %v836 = vadd.f32 0.0, %v835
        %v837 = vpop.f32.mrf.mxu0
        %838 = vdwg.mxu0
        %v839 = vmul.f32 %v808, 0.17677669
        %v840 = vmul.f32 %v836, 0.17677669
        %vm841 = vcmask 128000
        %v842 = vsel %vm841, %v839, -inf
        %843 = vmax.xlane.f32.xlu0 %v842
        %v844 = vpop.xlane.xlu0 %843
        %v845 = vsel %vm841, %v840, -inf
        %846 = vmax.xlane.f32.xlu0 %v845
        %v847 = vpop.xlane.xlu0 %846
        %v848 = vsub.f32 %v839, %v844
        %v849 = vsub.f32 %v840, %v847
        %v850 = vmul.f32 %v848, 1.442695
        %v851 = vpow.pop %v850
        %v852 = vmul.f32 %v849, 1.442695
        %v853 = vpow.pop %v852
        %v854 = vsel %vm841, %v851, 0.0
        %855 = vadd.xlane.f32.xlu0 %v854
        %v856 = vpop.xlane.xlu0 %855
        %v857 = vsel %vm841, %v853, 0.0
        %858 = vadd.xlane.f32.xlu0 %v857
        %v859 = vpop.xlane.xlu0 %858
        %v860 = vrcp.pop %v856
        %v861 = vmul.f32 %v856, %v860
        %v862 = vsub.f32 1.0, %v861
        %v863 = vmul.f32 %v860, %v862
        %v864 = vadd.f32 %v860, %v863
        %vm865 = vweird.f32 %v856
        %vm866 = vweird.f32 %v860
        %vm867 = vmor %vm865, %vm866
        %v868 = vsel %vm867, %v860, %v864
        %v869 = vand.u32 2147483647, %v856
        %vm870 = vcmp.eq.f32.partialorder %v869, 8.507059e+37
        %v871 = vand.u32 %v856, 2147483648
        %v872 = vor.u32 1.1754944e-38, %v871
        %v873 = vsel %vm870, %v872, %v868
        %v874 = vmul.f32 %v851, %v873
        %v875 = vrcp.pop %v859
        %v876 = vmul.f32 %v859, %v875
        %v877 = vsub.f32 1.0, %v876
        %v878 = vmul.f32 %v875, %v877
        %v879 = vadd.f32 %v875, %v878
        %vm880 = vweird.f32 %v859
        %vm881 = vweird.f32 %v875
        %vm882 = vmor %vm880, %vm881
        %v883 = vsel %vm882, %v875, %v879
        %v884 = vand.u32 2147483647, %v859
        %vm885 = vcmp.eq.f32.partialorder %v884, 8.507059e+37
        %v886 = vand.u32 %v859, 2147483648
        %v887 = vor.u32 1.1754944e-38, %v886
        %v888 = vsel %vm885, %v887, %v883
        %v889 = vmul.f32 %v853, %v888
        %v890 = vld [vmem:[#allocation3] sm:$0xff]
        %v891 = vld [vmem:[#allocation3 + $0x8] sm:$0xff]
        %v892 = vld [vmem:[#allocation3 + $0x10] sm:$0xff]
        %v893 = vld [vmem:[#allocation3 + $0x18] sm:$0xff]
        %vm894 = vcmask 48128
        %v896 = vsel %vm894, %v890, 0
        %v899 = vsel %vm894, %v891, 0
        %vm901 = vcmask 1045504
        %v903 = vsel %vm901, %v874, 0
        %905 = vmatpush.msra.mxu0 0.0
        %906 = vmatpush.msra.mxu0 0.0
        %907 = vmatpush.msra.mxu0 0.0
        %908 = vmatpush.msra.mxu0 0.0
        %909 = vmatpush.msra.mxu0 0.0
        %910 = vmatpush.msra.mxu0 0.0
        %911 = vmatpush.msra.mxu0 0.0
        %912 = vmatpush.msra.mxu0 0.0
        %913 = vmatpush.msra.mxu0 0.0
        %914 = vmatpush.msra.mxu0 0.0
        %915 = vmatpush.msra.mxu0 0.0
        %916 = vmatpush.msra.mxu0 0.0
        %917 = vmatpush.msra.mxu0 0.0
        %918 = vmatpush.msra.mxu0 0.0
        %919 = vmatpush.msra.mxu0 0.0
        %920 = vmatpush.msra.mxu0 %v903
        %921 = vmatmul.f32.gmra.mxu0 %v896
        %v922 = vpop.f32.mrf.mxu0
        %v923 = vadd.f32 0.0, %v922
        %924 = vmatmul.f32.gmra.mxu0 %v899
        %v925 = vpop.f32.mrf.mxu0
        %v926 = vadd.f32 0.0, %v925
        %927 = vdwg.mxu0
        %v929 = vsel %vm894, %v892, 0
        %v932 = vsel %vm894, %v893, 0
        %v935 = vsel %vm901, %v889, 0
        %937 = vmatpush.msra.mxu0 0.0
        %938 = vmatpush.msra.mxu0 0.0
        %939 = vmatpush.msra.mxu0 0.0
        %940 = vmatpush.msra.mxu0 0.0
        %941 = vmatpush.msra.mxu0 0.0
        %942 = vmatpush.msra.mxu0 0.0
        %943 = vmatpush.msra.mxu0 0.0
        %944 = vmatpush.msra.mxu0 0.0
        %945 = vmatpush.msra.mxu0 0.0
        %946 = vmatpush.msra.mxu0 0.0
        %947 = vmatpush.msra.mxu0 0.0
        %948 = vmatpush.msra.mxu0 0.0
        %949 = vmatpush.msra.mxu0 0.0
        %950 = vmatpush.msra.mxu0 0.0
        %951 = vmatpush.msra.mxu0 0.0
        %952 = vmatpush.msra.mxu0 %v935
        %953 = vmatmul.f32.gmra.mxu0 %v929
        %v954 = vpop.f32.mrf.mxu0
        %v955 = vadd.f32 0.0, %v954
        %956 = vmatmul.f32.gmra.mxu0 %v932
        %v957 = vpop.f32.mrf.mxu0
        %v958 = vadd.f32 0.0, %v957
        %959 = vdwg.mxu0
        %960 = vst.msk [vmem:[%s211] sm:$0xff] %vm367, %v923
        %961 = vst.msk [vmem:[%s211 + $0x8] sm:$0xff] %vm367, %v926
        %962 = vst.msk [vmem:[%s211 + $0x10] sm:$0xff] %vm367, %v955
        %963 = vst.msk [vmem:[%s211 + $0x18] sm:$0xff] %vm367, %v958
        %s964 = sand.u32 %s120, 1
        %s965 = scalar_lea.sflag [#allocation5], %s964
        %s966 = sand.u32 %s120, 1
        %s967 = smul.addr %s966, 32
        %s968 = scalar_lea.vmem [#allocation4], %s967
        // Predicated region
        $region37: #{_prob_attention_impl.1} parent=35 // pred_check
          %p969 = pneg %p130
        $region38: #{_prob_attention_impl.1} parent=35 // pred_check_branch
          %971 = sbr.rel (%p969) target = $region40
        $region39: #{_prob_attention_impl.1} parent=35 // pred_region
          %s972 = smul.u32 2, %s18
          %974 = vsyncadd %s965, 0
          %s975 = smul.addr %s972, 2
          %s976 = smul.addr %s975, 8
          %s977 = scalar_lea.hbm %s4, %s976
          %s978 = sshll.u32 %s968, 4
          %s979 = int_to_ptr.vmem [resolvable:$true] %s978
          %s980 = sshll.u32 %s977, 4
          %s981 = int_to_ptr.hbm [resolvable:$true] %s980
          %986 = dma.vmem_to_hbm [thread:$0]  %s979, 512, %s981, %s965, 128, 128, 8
        $region40: #{_prob_attention_impl.1} parent=35 // pred_fallthru
          _
      $region36: #{_prob_attention_impl.1} parent=5 // pred_fallthru
        _
      %p987 = scmp.le.s32.totalorder 2, %s13
      // Predicated region
      $region41: #{_prob_attention_impl.1} parent=5 // pred_check
        %p988 = pneg %p987
      $region42: #{_prob_attention_impl.1} parent=5 // pred_check_branch
        %990 = sbr.rel (%p988) target = $region44
      $region43: #{_prob_attention_impl.1} parent=5 // pred_region
        %s991 = ssub.s32 %s13, 2
        // Predicated region
        $region45: #{_prob_attention_impl.1} parent=43 // pred_check
          %p992 = pneg %p136
        $region46: #{_prob_attention_impl.1} parent=43 // pred_check_branch
          %994 = sbr.rel (%p992) target = $region48
        $region47: #{_prob_attention_impl.1} parent=43 // pred_region
          %s995 = sand.u32 %s121, 1
          %s996 = scalar_lea.sflag [#allocation5], %s995
          %s997 = sand.u32 %s121, 1
          %s998 = smul.addr %s997, 32
          %s999 = scalar_lea.vmem [#allocation4], %s998
          %1001 = dma.done %s996, 512
        $region48: #{_prob_attention_impl.1} parent=43 // pred_fallthru
          _
      $region44: #{_prob_attention_impl.1} parent=5 // pred_fallthru
        _
    $region6: #{_prob_attention_impl.1} parent=1 // loop_footer
      %s17 = sadd.s32 1, %s13
    $region7: #{_prob_attention_impl.1} parent=1 // loop_footer_branch
      %12 = sbr.rel target = $region3
    $region8: #{_prob_attention_impl.1} parent=1 // loop_exit
      _
    %1002 = vsyncpa [#allocation5], 1
    %s1003 = scalar_lea.sflag [#allocation5], 1
    %1004 = vsyncpa %s1003, 1

</llo_original>
